<compile_context>
chip_gen: v7x
topology: tpu7x:2x2x1
jax: 0.10.0
libtpu: 0.0.40
codegen_flags: <defaults>
</compile_context>

<pallas_src>
import functools

import jax
import jax.numpy as jnp
import numpy as np
from jax.experimental import pallas as pl
from jax.experimental.pallas import tpu as pltpu


def _adagn_kernel(gamma_ref, beta_ref, x_ref, out_ref, *,
                  groups_per_block, eps, inv_n, chunk, n_chunks, unroll):
    # gamma_ref : (Bblk, Cb, 1)   precomputed 1 + scale   (f32)
    # beta_ref  : (Bblk, Cb, 1)   precomputed shift       (f32)
    # x_ref     : (Bblk, Cb, HWp) slab: batch block x group block x padded spatial
    # out_ref   : (Bblk, Cb, HWp)
    Bblk, Cb, HWp = x_ref.shape
    G = groups_per_block
    Cg = Cb // G

    # ---- pass 1: per-channel sum / sum-of-squares, accumulated over lane chunks.
    #      Chunking bounds the f32 temporaries' live range (no whole-slab upcast).
    def accum(j, carry):
        s1, s2 = carry
        start = pl.multiple_of(j * chunk, chunk)
        xc = x_ref[:, :, pl.ds(start, chunk)].astype(jnp.float32)
        s1 = s1 + jnp.sum(xc, axis=-1, keepdims=True)
        s2 = s2 + jnp.sum(xc * xc, axis=-1, keepdims=True)
        return s1, s2

    zeros = jnp.zeros((Bblk, Cb, 1), jnp.float32)
    s1, s2 = jax.lax.fori_loop(0, n_chunks, accum, (zeros, zeros), unroll=unroll)

    # ---- fold channels -> groups on a sublane-split view (lane dim stays 1,
    #      reduce over axis=-2; no cross-lane relayout).
    g1 = jnp.sum(s1.reshape(Bblk * G, Cg, 1), axis=-2, keepdims=True)  # (Bblk*G,1,1)
    g2 = jnp.sum(s2.reshape(Bblk * G, Cg, 1), axis=-2, keepdims=True)

    mean_g = g1 * inv_n
    var_g = jnp.maximum(g2 * inv_n - mean_g * mean_g, 0.0)   # clamp f32 cancellation
    rstd_g = jax.lax.rsqrt(var_g + eps)

    # ---- broadcast group stats back to per-channel (Cb, 1) columns (sublane bcast).
    mean_c = jnp.broadcast_to(mean_g, (Bblk * G, Cg, 1)).reshape(Bblk, Cb, 1)
    rstd_c = jnp.broadcast_to(rstd_g, (Bblk * G, Cg, 1)).reshape(Bblk, Cb, 1)

    # ---- fused normalize + adaptive modulation: out = x * a + b (a, b hoisted).
    gamma = gamma_ref[...].astype(jnp.float32)
    beta = beta_ref[...].astype(jnp.float32)
    a = gamma * rstd_c
    b = beta - mean_c * a

    def write(j, carry):
        start = pl.multiple_of(j * chunk, chunk)
        xc = x_ref[:, :, pl.ds(start, chunk)].astype(jnp.float32)
        out_ref[:, :, pl.ds(start, chunk)] = (xc * a + b).astype(out_ref.dtype)
        return carry

    jax.lax.fori_loop(0, n_chunks, write, 0, unroll=unroll)


def adaptive_group_norm(x, style, lin_w, lin_b, *, num_groups, eps=1e-5):
    """x: (B, C, *spatial) NCHW; style: (B, L); lin_w: (2C, L); lin_b: (2C,)."""
    B, C = x.shape[0], x.shape[1]
    spatial = x.shape[2:]
    HW = int(np.prod(spatial)) if len(spatial) else 1
    G = num_groups
    assert C % G == 0
    Cg = C // G
    assert style.shape[0] == B and lin_w.shape == (2 * C, style.shape[1])

    # Style linear hoisted out of the kernel: one (B,L)x(L,2C) matmul instead of a
    # 1-row MXU matmul + XLU transposes per grid step.
    s = (style.astype(jnp.float32) @ lin_w.astype(jnp.float32).T
         + lin_b.astype(jnp.float32))                               # (B, 2C)
    gamma = (1.0 + s[:, :C]).reshape(B, C, 1)                       # (B, C, 1)
    beta = s[:, C:].reshape(B, C, 1)                                # (B, C, 1)

    x3 = x.reshape(B, C, HW)

    # Lane-dense last dim: pad HW to a multiple of 128. Zero pads contribute 0 to
    # the sums and inv_n uses the real HW, so stats are exact; padded output
    # columns are sliced off below.
    HWp = ((HW + 127) // 128) * 128
    if HWp != HW:
        x3 = jnp.pad(x3, ((0, 0), (0, 0), (0, HWp - HW)))

    in_bytes = x3.dtype.itemsize
    out_bytes = x.dtype.itemsize

    # --- per-generation VMEM budget (v7x has 64 MiB/TC; v5e/v6e 128 MiB) ---------
    try:
        info = pltpu.get_tpu_info()
        vmem_cap = int(getattr(info, "vmem_capacity_bytes", 64 << 20))
    except Exception:  # pragma: no cover - conservative fallback off-TPU
        vmem_cap = 64 << 20
    block_cap = (4 << 20) if vmem_cap <= (64 << 20) else (8 << 20)

    # --- group (channel) tiling: bounds per-step VMEM; gblk*Cg sublane-aligned ---
    sub = {4: 8, 2: 16, 1: 32}.get(in_bytes, 8)
    cands = [d for d in range(1, G + 1)
             if G % d == 0 and ((d * Cg) % sub == 0 or d == G)]
    gblk = cands[0]
    for d in cands:
        if Cg * d * HWp * (in_bytes + out_bytes) <= block_cap:
            gblk = d
    Cb = gblk * Cg
    n_gblocks = G // gblk
    per_batch_block = Cb * HWp * (in_bytes + out_bytes)
    # TODO(synk): if a single group's slab (Cg*HWp) ever exceeds the VMEM budget,
    # add an HW-tiled two-pass (sums then normalize) fallback.

    # --- batch tiling: fill the budget but keep >= 2 parallel grid steps (v7x) ---
    bblk = 1
    for b_try in range(1, B + 1):
        if b_try * per_batch_block > block_cap:
            break
        steps = (-(-B // b_try)) * n_gblocks
        if steps >= 2 or B * n_gblocks < 2:
            bblk = b_try
    n_bblocks = -(-B // bblk)

    # --- HW chunk inside the kernel: bounds the f32 temporaries' live range ------
    chunk_budget = max(128, (1 << 20) // max(1, bblk * Cb * 4))
    chunk = 128
    for c_try in range(128, HWp + 1, 128):
        if HWp % c_try == 0 and c_try <= chunk_budget:
            chunk = c_try
    n_chunks = HWp // chunk
    unroll = True if n_chunks <= 8 else 4

    # --- scoped VMEM: double-buffered IO blocks + chunk temps, capped to device --
    temp_bytes = 2 * bblk * Cb * chunk * 4 + 16 * bblk * Cb * 4
    vmem_limit = 2 * bblk * per_batch_block + temp_bytes + (4 << 20)
    vmem_limit = int(min(max(vmem_limit, 32 << 20), int(0.85 * vmem_cap)))

    kernel = functools.partial(
        _adagn_kernel,
        groups_per_block=gblk,
        eps=float(eps),
        inv_n=1.0 / float(Cg * HW),
        chunk=chunk,
        n_chunks=n_chunks,
        unroll=unroll,
    )

    out = pl.pallas_call(
        kernel,
        out_shape=jax.ShapeDtypeStruct((B, C, HWp), x.dtype),
        grid=(n_bblocks, n_gblocks),
        in_specs=[
            pl.BlockSpec((bblk, Cb, 1), lambda i, j: (i, j, 0)),      # gamma = 1+scale
            pl.BlockSpec((bblk, Cb, 1), lambda i, j: (i, j, 0)),      # beta  = shift
            pl.BlockSpec((bblk, Cb, HWp), lambda i, j: (i, j, 0)),    # x slab
        ],
        out_specs=pl.BlockSpec((bblk, Cb, HWp), lambda i, j: (i, j, 0)),
        compiler_params=pltpu.CompilerParams(
            dimension_semantics=("parallel", "parallel"),
            vmem_limit_bytes=vmem_limit,
        ),
    )(gamma, beta, x3)

    if HWp != HW:
        out = out[:, :, :HW]
    return out.reshape(x.shape)


def _reference(x, style, lin_w, lin_b, *, num_groups, eps=1e-5):
    B, C = x.shape[0], x.shape[1]
    s = style @ lin_w.T + lin_b                       # (B, 2C)
    scale, shift = s[:, :C], s[:, C:]
    xg = x.reshape(B, num_groups, -1)
    mean = xg.mean(-1, keepdims=True)
    var = ((xg - mean) ** 2).mean(-1, keepdims=True)
    norm = ((xg - mean) / jnp.sqrt(var + eps)).reshape(x.shape)
    bshape = (B, C) + (1,) * (x.ndim - 2)
    return norm * (1.0 + scale.reshape(bshape)) + shift.reshape(bshape)


if __name__ == "__main__":
    # Small shapes consistent with the module's forward.
    B, C, H, W = 2, 8, 16, 16
    num_groups = 4
    style_channels = 16
    eps = 1e-5

    key = jax.random.PRNGKey(0)
    kx, ks, kw, kb = jax.random.split(key, 4)
    x = jax.random.normal(kx, (B, C, H, W), dtype=jnp.float32)
    style = jax.random.normal(ks, (B, style_channels), dtype=jnp.float32)

    # Deterministic synthetic parameters for nn.Linear(style_channels, 2*C):
    #   weight (2C, L), bias (2C,) -- uniform like PyTorch default, bound 1/sqrt(L).
    bound = 1.0 / np.sqrt(style_channels)
    lin_w = jax.random.uniform(kw, (2 * C, style_channels),
                               minval=-bound, maxval=bound, dtype=jnp.float32)
    lin_b = jax.random.uniform(kb, (2 * C,),
                               minval=-bound, maxval=bound, dtype=jnp.float32)

    out = adaptive_group_norm(x, style, lin_w, lin_b,
                              num_groups=num_groups, eps=eps)
    out = jax.block_until_ready(out)

    ref = _reference(x, style, lin_w, lin_b, num_groups=num_groups, eps=eps)
    np.testing.assert_allclose(np.asarray(out), np.asarray(ref),
                               rtol=1e-5, atol=2e-5)
    print("KERNEL_OK")
</pallas_src>

<mosaic_0001>
module attributes {stable_mosaic.version = 11 : i64} {
  func.func @_adagn_kernel(%arg0: i32, %arg1: i32, %arg2: memref<1x8x1xf32, #tpu.memory_space<vmem>>, %arg3: memref<1x8x1xf32, #tpu.memory_space<vmem>>, %arg4: memref<1x8x256xf32, #tpu.memory_space<vmem>>, %arg5: memref<1x8x256xf32, #tpu.memory_space<vmem>>) attributes {dimension_semantics = [#tpu.dimension_semantics<parallel>, #tpu.dimension_semantics<parallel>], iteration_bounds = array<i64: 2, 1>, scalar_prefetch = 0 : i64, scratch_operands = 0 : i64, tpu.core_type = #tpu.core_type<tc>, window_params = [{transform_indices = @transform_0, window_bounds = array<i64: 1, 8, 1>}, {transform_indices = @transform_1, window_bounds = array<i64: 1, 8, 1>}, {transform_indices = @transform_2, window_bounds = array<i64: 1, 8, 256>}, {transform_indices = @transform_3, window_bounds = array<i64: 1, 8, 256>}]} {
    %cst = arith.constant 0.000000e+00 : f32
    %0 = vector.broadcast %cst : f32 to vector<1x8x1xf32>
    %c0_i32 = arith.constant 0 : i32
    %c256_i32 = arith.constant 256 : i32
    %1 = arith.muli %c0_i32, %c256_i32 : i32
    %2 = tpu.assume_multiple %1, 256 : i32
    %c0 = arith.constant 0 : index
    %c0_0 = arith.constant 0 : index
    %3 = arith.index_cast %2 : i32 to index
    %4 = vector.load %arg4[%c0, %c0_0, %3] : memref<1x8x256xf32, #tpu.memory_space<vmem>>, vector<1x8x256xf32>
    %cst_1 = arith.constant dense<0.000000e+00> : vector<1x8xf32>
    %5 = vector.multi_reduction <add>, %4, %cst_1 [2] : vector<1x8x256xf32> to vector<1x8xf32>
    %6 = vector.shape_cast %5 : vector<1x8xf32> to vector<1x8x1xf32>
    %7 = arith.addf %0, %6 : vector<1x8x1xf32>
    %8 = arith.mulf %4, %4 : vector<1x8x256xf32>
    %cst_2 = arith.constant dense<0.000000e+00> : vector<1x8xf32>
    %9 = vector.multi_reduction <add>, %8, %cst_2 [2] : vector<1x8x256xf32> to vector<1x8xf32>
    %10 = vector.shape_cast %9 : vector<1x8xf32> to vector<1x8x1xf32>
    %11 = arith.addf %0, %10 : vector<1x8x1xf32>
    %c1_i32 = arith.constant 1 : i32
    %12 = vector.shape_cast %7 : vector<1x8x1xf32> to vector<4x2x1xf32>
    %cst_3 = arith.constant dense<0.000000e+00> : vector<4x1xf32>
    %13 = vector.multi_reduction <add>, %12, %cst_3 [1] : vector<4x2x1xf32> to vector<4x1xf32>
    %14 = vector.shape_cast %13 : vector<4x1xf32> to vector<4x1x1xf32>
    %15 = vector.shape_cast %11 : vector<1x8x1xf32> to vector<4x2x1xf32>
    %cst_4 = arith.constant dense<0.000000e+00> : vector<4x1xf32>
    %16 = vector.multi_reduction <add>, %15, %cst_4 [1] : vector<4x2x1xf32> to vector<4x1xf32>
    %17 = vector.shape_cast %16 : vector<4x1xf32> to vector<4x1x1xf32>
    %cst_5 = arith.constant 0.001953125 : f32
    %18 = vector.broadcast %cst_5 : f32 to vector<4x1x1xf32>
    %19 = arith.mulf %14, %18 : vector<4x1x1xf32>
    %cst_6 = arith.constant 0.001953125 : f32
    %20 = vector.broadcast %cst_6 : f32 to vector<4x1x1xf32>
    %21 = arith.mulf %17, %20 : vector<4x1x1xf32>
    %22 = arith.mulf %19, %19 : vector<4x1x1xf32>
    %23 = arith.subf %21, %22 : vector<4x1x1xf32>
    %cst_7 = arith.constant 0.000000e+00 : f32
    %24 = vector.broadcast %cst_7 : f32 to vector<4x1x1xf32>
    %25 = arith.maximumf %23, %24 : vector<4x1x1xf32>
    %cst_8 = arith.constant 9.99999974E-6 : f32
    %26 = vector.broadcast %cst_8 : f32 to vector<4x1x1xf32>
    %27 = arith.addf %25, %26 : vector<4x1x1xf32>
    %28 = math.rsqrt %27 : vector<4x1x1xf32>
    %29 = vector.shape_cast %19 : vector<4x1x1xf32> to vector<4x1x1xf32>
    %30 = vector.broadcast %29 : vector<4x1x1xf32> to vector<4x2x1xf32>
    %31 = vector.shape_cast %30 : vector<4x2x1xf32> to vector<1x8x1xf32>
    %32 = vector.shape_cast %28 : vector<4x1x1xf32> to vector<4x1x1xf32>
    %33 = vector.broadcast %32 : vector<4x1x1xf32> to vector<4x2x1xf32>
    %34 = vector.shape_cast %33 : vector<4x2x1xf32> to vector<1x8x1xf32>
    %c0_9 = arith.constant 0 : index
    %c0_10 = arith.constant 0 : index
    %c0_11 = arith.constant 0 : index
    %35 = vector.load %arg2[%c0_9, %c0_10, %c0_11] : memref<1x8x1xf32, #tpu.memory_space<vmem>>, vector<1x8x1xf32>
    %c0_12 = arith.constant 0 : index
    %c0_13 = arith.constant 0 : index
    %c0_14 = arith.constant 0 : index
    %36 = vector.load %arg3[%c0_12, %c0_13, %c0_14] : memref<1x8x1xf32, #tpu.memory_space<vmem>>, vector<1x8x1xf32>
    %37 = arith.mulf %35, %34 : vector<1x8x1xf32>
    %38 = arith.mulf %31, %37 : vector<1x8x1xf32>
    %39 = arith.subf %36, %38 : vector<1x8x1xf32>
    %c0_i32_15 = arith.constant 0 : i32
    %c256_i32_16 = arith.constant 256 : i32
    %40 = arith.muli %c0_i32_15, %c256_i32_16 : i32
    %41 = tpu.assume_multiple %40, 256 : i32
    %c0_17 = arith.constant 0 : index
    %c0_18 = arith.constant 0 : index
    %42 = arith.index_cast %41 : i32 to index
    %43 = vector.load %arg4[%c0_17, %c0_18, %42] : memref<1x8x256xf32, #tpu.memory_space<vmem>>, vector<1x8x256xf32>
    %44 = vector.broadcast %37 : vector<1x8x1xf32> to vector<1x8x256xf32>
    %45 = arith.mulf %43, %44 : vector<1x8x256xf32>
    %46 = vector.broadcast %39 : vector<1x8x1xf32> to vector<1x8x256xf32>
    %47 = arith.addf %45, %46 : vector<1x8x256xf32>
    %c0_19 = arith.constant 0 : index
    %c0_20 = arith.constant 0 : index
    %48 = arith.index_cast %41 : i32 to index
    %49 = vector.load %arg5[%c0_19, %c0_20, %48] : memref<1x8x256xf32, #tpu.memory_space<vmem>>, vector<1x8x256xf32>
    tpu.vector_store %arg5[%c0_19, %c0_20, %48], %47 {strides = array<i32>} : memref<1x8x256xf32, #tpu.memory_space<vmem>>, vector<1x8x256xf32>,
    %c1_i32_21 = arith.constant 1 : i32
    return
  }
  func.func @transform_0(%arg0: i32, %arg1: i32) -> (i32, i32, i32) {
    %c0_i32 = arith.constant 0 : i32
    %c0_i32_0 = arith.constant 0 : i32
    return %arg0, %arg1, %c0_i32 : i32, i32, i32
  }
  func.func @transform_1(%arg0: i32, %arg1: i32) -> (i32, i32, i32) {
    %c0_i32 = arith.constant 0 : i32
    %c0_i32_0 = arith.constant 0 : i32
    return %arg0, %arg1, %c0_i32 : i32, i32, i32
  }
  func.func @transform_2(%arg0: i32, %arg1: i32) -> (i32, i32, i32) {
    %c0_i32 = arith.constant 0 : i32
    %c0_i32_0 = arith.constant 0 : i32
    return %arg0, %arg1, %c0_i32 : i32, i32, i32
  }
  func.func @transform_3(%arg0: i32, %arg1: i32) -> (i32, i32, i32) {
    %c0_i32 = arith.constant 0 : i32
    %c0_i32_0 = arith.constant 0 : i32
    return %arg0, %arg1, %c0_i32 : i32, i32, i32
  }
}

</mosaic_0001>

<llo_original>
// kernel: tpu_custom_call.1
$region0: #{tpu_custom_call.1}
  #allocation0 [shape = 'u32[]', space=smem, size = 0x4, offset = 0x4, fixed_abs, tag = 'smem constant byte address 0x4 - core index']
  #allocation1 [shape = 'u32[144,128]{1,0:T(1,128)}', space=vmem, size = 0x12000, scoped, tag = 'internal scratch']
  %s0 = inlined_call_operand.vmem [shape: f32[2,8,1], index: 0, kind: input, shape index: {}]
  %s1 = inlined_call_operand.vmem [shape: f32[2,8,1], index: 1, kind: input, shape index: {}]
  %s2 = inlined_call_operand.vmem [shape: f32[2,8,256], index: 2, kind: input, shape index: {}]
  %s3 = inlined_call_operand.hbm [shape: f32[2,8,256], index: 3, kind: output, shape index: {}]
  %s4 = sld [smem:[#allocation0]]
  $region45: #{tpu_custom_call.1} parent=0
    _
  %s6 = ssub.s32 1, %s4
  %s7 = scalar_select 0, %s6, %s4
  $region1: #{tpu_custom_call.1} parent=0
    #allocation2 [shape = 'u8[16384]{0}', space=vmem, size = 0x4000, scoped, tag = 'output window, operand 0']
    #allocation3 [shape = 's32[2]{0}', space=sflag, size = 0x8, scoped, tag = 'scoped memory for tpu_custom_call.1']
    %8 = vsyncpa [#allocation3], 0
    %s9 = scalar_lea.sflag [#allocation3], 1
    %10 = vsyncpa %s9, 0
    loop: start=0, step=1, limit=4
    $region2: #{tpu_custom_call.1} parent=1 // loop_pre_header
      _
    $region3: #{tpu_custom_call.1} parent=1 // loop_header
      %s12 = sphi 0, %s16
      %p13 = scmp.ge.s32.totalorder %s12, 4
      %s19 = sphi 0, %s31
      %s20 = sphi 0, %s27
      %s21 = sphi 0, %s19
      %s22 = sphi 0, %s20
      %s23 = sphi 0, %s21
      %s24 = sphi 0, %s22
      %s36 = sphi 0, %s38
      %s39 = sphi 0, %s36
      %s40 = sphi 0, %s39
      %s56 = sphi 0, %s40
      %s64 = sphi 0, %s66
      %s67 = sphi 0, %s64
      %s68 = sphi 0, %s67
      %s84 = sphi 0, %s68
      %s92 = sphi 0, %s94
      %s95 = sphi 0, %s92
      %s96 = sphi 0, %s95
      %s112 = sphi 0, %s96
      %s120 = sphi 0, %s122
      %s123 = sphi 0, %s120
      %s124 = sphi 0, %s123
      %s140 = sphi 0, %s124
    $region4: #{tpu_custom_call.1} parent=1 // loop_header_branch
      %15 = sbr.rel (%p13) target = $region8
    $region5: #{tpu_custom_call.1} parent=1 // loop_body
      %s17 = ssub.s32 %s12, 1
      %s18 = ssub.s32 %s12, 2
      %s25 = sadd.s32 1, %s20
      %p26 = scmp.ge.s32.totalorder %s25, 1
      %s27 = scalar_select %p26, 0, %s25
      %s28 = sadd.s32 1, %s19
      %s29 = scalar_select %p26, %s28, %s19
      %p30 = scmp.ge.s32.totalorder %s29, 2
      %s31 = scalar_select %p30, 0, %s29
      %s32 = ssub.s32 %s19, %s31
      %s33 = ssub.s32 %s20, %s27
      %s34 = sor.u32 %s32, %s33
      %p35 = scmp.eq.s32.totalorder %s34, 0
      %s37 = sadd.s32 %s36, 1
      %s38 = scalar_select %p35, %s36, %s37
      %p41 = pneg %p35
      %p42 = scmp.eq.s32.totalorder %s12, 1
      %p43 = por %p41, %p42
      %p44 = scmp.ne.s32.totalorder %s36, %s39
      %p45 = scmp.eq.s32.totalorder %s12, 0
      %p46 = por %p44, %p45
      %p47 = scmp.ne.s32.totalorder %s36, %s39
      %p48 = scmp.eq.s32.totalorder %s17, 1
      %p49 = por %p47, %p48
      %p50 = scmp.ne.s32.totalorder %s39, %s40
      %p51 = scmp.eq.s32.totalorder %s17, 0
      %p52 = por %p50, %p51
      %p53 = scmp.ne.s32.totalorder %s39, %s40
      %p54 = scmp.eq.s32.totalorder %s18, 1
      %p55 = por %p53, %p54
      %p57 = scmp.ne.s32.totalorder %s40, %s56
      %p58 = scmp.eq.s32.totalorder %s18, 0
      %p59 = por %p57, %p58
      %s60 = ssub.s32 %s19, %s31
      %s61 = ssub.s32 %s20, %s27
      %s62 = sor.u32 %s60, %s61
      %p63 = scmp.eq.s32.totalorder %s62, 0
      %s65 = sadd.s32 %s64, 1
      %s66 = scalar_select %p63, %s64, %s65
      %p69 = pneg %p63
      %p70 = scmp.eq.s32.totalorder %s12, 1
      %p71 = por %p69, %p70
      %p72 = scmp.ne.s32.totalorder %s64, %s67
      %p73 = scmp.eq.s32.totalorder %s12, 0
      %p74 = por %p72, %p73
      %p75 = scmp.ne.s32.totalorder %s64, %s67
      %p76 = scmp.eq.s32.totalorder %s17, 1
      %p77 = por %p75, %p76
      %p78 = scmp.ne.s32.totalorder %s67, %s68
      %p79 = scmp.eq.s32.totalorder %s17, 0
      %p80 = por %p78, %p79
      %p81 = scmp.ne.s32.totalorder %s67, %s68
      %p82 = scmp.eq.s32.totalorder %s18, 1
      %p83 = por %p81, %p82
      %p85 = scmp.ne.s32.totalorder %s68, %s84
      %p86 = scmp.eq.s32.totalorder %s18, 0
      %p87 = por %p85, %p86
      %s88 = ssub.s32 %s19, %s31
      %s89 = ssub.s32 %s20, %s27
      %s90 = sor.u32 %s88, %s89
      %p91 = scmp.eq.s32.totalorder %s90, 0
      %s93 = sadd.s32 %s92, 1
      %s94 = scalar_select %p91, %s92, %s93
      %p97 = pneg %p91
      %p98 = scmp.eq.s32.totalorder %s12, 1
      %p99 = por %p97, %p98
      %p100 = scmp.ne.s32.totalorder %s92, %s95
      %p101 = scmp.eq.s32.totalorder %s12, 0
      %p102 = por %p100, %p101
      %p103 = scmp.ne.s32.totalorder %s92, %s95
      %p104 = scmp.eq.s32.totalorder %s17, 1
      %p105 = por %p103, %p104
      %p106 = scmp.ne.s32.totalorder %s95, %s96
      %p107 = scmp.eq.s32.totalorder %s17, 0
      %p108 = por %p106, %p107
      %p109 = scmp.ne.s32.totalorder %s95, %s96
      %p110 = scmp.eq.s32.totalorder %s18, 1
      %p111 = por %p109, %p110
      %p113 = scmp.ne.s32.totalorder %s96, %s112
      %p114 = scmp.eq.s32.totalorder %s18, 0
      %p115 = por %p113, %p114
      %s116 = ssub.s32 %s19, %s31
      %s117 = ssub.s32 %s20, %s27
      %s118 = sor.u32 %s116, %s117
      %p119 = scmp.eq.s32.totalorder %s118, 0
      %s121 = sadd.s32 %s120, 1
      %s122 = scalar_select %p119, %s120, %s121
      %p125 = pneg %p119
      %p126 = scmp.eq.s32.totalorder %s12, 1
      %p127 = por %p125, %p126
      %p128 = scmp.ne.s32.totalorder %s120, %s123
      %p129 = scmp.eq.s32.totalorder %s12, 0
      %p130 = por %p128, %p129
      %p131 = scmp.ne.s32.totalorder %s120, %s123
      %p132 = scmp.eq.s32.totalorder %s17, 1
      %p133 = por %p131, %p132
      %p134 = scmp.ne.s32.totalorder %s123, %s124
      %p135 = scmp.eq.s32.totalorder %s17, 0
      %p136 = por %p134, %p135
      %p137 = scmp.ne.s32.totalorder %s123, %s124
      %p138 = scmp.eq.s32.totalorder %s18, 1
      %p139 = por %p137, %p138
      %p141 = scmp.ne.s32.totalorder %s124, %s140
      %p142 = scmp.eq.s32.totalorder %s18, 0
      %p143 = por %p141, %p142
      %p144 = scmp.le.s32.totalorder 1, %s12
      %p145 = scmp.lt.s32.totalorder %s12, 3
      %p146 = pnand %p144, %p145
      %p147 = pneg %p146
      // Predicated region
      $region9: #{tpu_custom_call.1} parent=5 // pred_check
        _
      $region10: #{tpu_custom_call.1} parent=5 // pred_check_branch
        %149 = sbr.rel (%p146) target = $region12
      $region11: #{tpu_custom_call.1} parent=5 // pred_region
        %s150 = ssub.s32 %s12, 1
      $region12: #{tpu_custom_call.1} parent=5 // pred_fallthru
        _
      %p151 = scmp.lt.s32.totalorder %s12, 2
      // Predicated region
      $region13: #{tpu_custom_call.1} parent=5 // pred_check
        %p152 = pneg %p151
      $region14: #{tpu_custom_call.1} parent=5 // pred_check_branch
        %154 = sbr.rel (%p152) target = $region16
      $region15: #{tpu_custom_call.1} parent=5 // pred_region
        // Predicated region
        $region17: #{tpu_custom_call.1} parent=15 // pred_check
          %p155 = pneg %p46
        $region18: #{tpu_custom_call.1} parent=15 // pred_check_branch
          %157 = sbr.rel (%p155) target = $region20
        $region19: #{tpu_custom_call.1} parent=15 // pred_region
          %p158 = scmp.lt.s32.totalorder %s19, 1
          %s159 = scalar_select %p158, %s19, 1
          %p160 = scmp.lt.s32.totalorder %s20, 0
          %s161 = scalar_select %p160, %s20, 0
          %s162 = sadd.s32 %s161, %s159
          %s163 = smul.addr %s162, 8
          %s164 = scalar_lea.vmem %s0, %s163
        $region20: #{tpu_custom_call.1} parent=15 // pred_fallthru
          _
        // Predicated region
        $region21: #{tpu_custom_call.1} parent=15 // pred_check
          %p165 = pneg %p74
        $region22: #{tpu_custom_call.1} parent=15 // pred_check_branch
          %167 = sbr.rel (%p165) target = $region24
        $region23: #{tpu_custom_call.1} parent=15 // pred_region
          %p168 = scmp.lt.s32.totalorder %s19, 1
          %s169 = scalar_select %p168, %s19, 1
          %p170 = scmp.lt.s32.totalorder %s20, 0
          %s171 = scalar_select %p170, %s20, 0
          %s172 = sadd.s32 %s171, %s169
          %s173 = smul.addr %s172, 8
          %s174 = scalar_lea.vmem %s1, %s173
        $region24: #{tpu_custom_call.1} parent=15 // pred_fallthru
          _
        // Predicated region
        $region25: #{tpu_custom_call.1} parent=15 // pred_check
          %p175 = pneg %p102
        $region26: #{tpu_custom_call.1} parent=15 // pred_check_branch
          %177 = sbr.rel (%p175) target = $region28
        $region27: #{tpu_custom_call.1} parent=15 // pred_region
          %p178 = scmp.lt.s32.totalorder %s19, 1
          %s179 = scalar_select %p178, %s19, 1
          %p180 = scmp.lt.s32.totalorder %s20, 0
          %s181 = scalar_select %p180, %s20, 0
          %s182 = smul.addr %s181, 2
          %s183 = smul.addr %s179, 2
          %s184 = sadd.s32 %s182, %s183
          %s185 = smul.addr %s184, 8
          %s186 = scalar_lea.vmem %s2, %s185
        $region28: #{tpu_custom_call.1} parent=15 // pred_fallthru
          _
      $region16: #{tpu_custom_call.1} parent=5 // pred_fallthru
        _
      %p187 = scmp.le.s32.totalorder 1, %s12
      %p188 = scmp.lt.s32.totalorder %s12, 3
      %p189 = pnand %p187, %p188
      %p190 = pneg %p189
      // Predicated region
      $region29: #{tpu_custom_call.1} parent=5 // pred_check
        _
      $region30: #{tpu_custom_call.1} parent=5 // pred_check_branch
        %192 = sbr.rel (%p189) target = $region32
      $region31: #{tpu_custom_call.1} parent=5 // pred_region
        %s193 = ssub.s32 %s12, 1
        %p194 = scmp.lt.s32.totalorder %s21, 1
        %s195 = scalar_select %p194, %s21, 1
        %p196 = scmp.lt.s32.totalorder %s22, 0
        %s197 = scalar_select %p196, %s22, 0
        %s198 = sadd.s32 %s197, %s195
        %s199 = smul.addr %s198, 8
        %s200 = scalar_lea.vmem %s0, %s199
        %p201 = pneg %p52
        %p202 = pneg %p49
        %p203 = scmp.lt.s32.totalorder %s21, 1
        %s204 = scalar_select %p203, %s21, 1
        %p205 = scmp.lt.s32.totalorder %s22, 0
        %s206 = scalar_select %p205, %s22, 0
        %s207 = sadd.s32 %s206, %s204
        %s208 = smul.addr %s207, 8
        %s209 = scalar_lea.vmem %s1, %s208
        %p210 = pneg %p80
        %p211 = pneg %p77
        %p212 = scmp.lt.s32.totalorder %s21, 1
        %s213 = scalar_select %p212, %s21, 1
        %p214 = scmp.lt.s32.totalorder %s22, 0
        %s215 = scalar_select %p214, %s22, 0
        %s216 = smul.addr %s215, 2
        %s217 = smul.addr %s213, 2
        %s218 = sadd.s32 %s216, %s217
        %s219 = smul.addr %s218, 8
        %s220 = scalar_lea.vmem %s2, %s219
        %p221 = pneg %p108
        %p222 = pneg %p105
        %p223 = pneg %p136
        %p224 = pneg %p133
        %s225 = sand.u32 %s123, 1
        %s226 = scalar_lea.sflag [#allocation3], %s225
        %s227 = sand.u32 %s123, 1
        %s228 = smul.addr %s227, 16
        %s229 = scalar_lea.vmem [#allocation2], %s228
        %p230 = scmp.lt.s32.totalorder %s21, 1
        %s231 = scalar_select %p230, %s21, 1
        %p232 = scmp.lt.s32.totalorder %s22, 0
        %s233 = scalar_select %p232, %s22, 0
        %s234 = sadd.s32 %s233, %s231
        %s235 = smul.addr %s234, 8
        %s236 = scalar_lea.vmem %s0, %s235
        %p237 = scmp.lt.s32.totalorder %s21, 1
        %s238 = scalar_select %p237, %s21, 1
        %p239 = scmp.lt.s32.totalorder %s22, 0
        %s240 = scalar_select %p239, %s22, 0
        %s241 = sadd.s32 %s240, %s238
        %s242 = smul.addr %s241, 8
        %s243 = scalar_lea.vmem %s1, %s242
        %p244 = scmp.lt.s32.totalorder %s21, 1
        %s245 = scalar_select %p244, %s21, 1
        %p246 = scmp.lt.s32.totalorder %s22, 0
        %s247 = scalar_select %p246, %s22, 0
        %s248 = smul.addr %s247, 2
        %s249 = smul.addr %s245, 2
        %s250 = sadd.s32 %s248, %s249
        %s251 = smul.addr %s250, 8
        %s252 = scalar_lea.vmem %s2, %s251
        %v253 = vld [vmem:[%s252] sm:$0xff]
        %v254 = vld [vmem:[%s252 + $0x8] sm:$0xff]
        %v255 = vadd.f32 %v253, %v254
        %256 = vadd.xlane.f32.xlu0 %v255
        %v257 = vpop.xlane.xlu0 %256
        %v258 = vadd.f32 %v257, 0.0
        %v259 = vmul.f32 %v253, %v253
        %v260 = vmul.f32 %v254, %v254
        %v261 = vadd.f32 %v259, %v260
        %262 = vadd.xlane.f32.xlu0 %v261
        %v263 = vpop.xlane.xlu0 %262
        %v264 = vadd.f32 %v263, 0.0
        %v267 = vunpack.c.l.s4 269488144
        %v268 = vunpack.c.0.s8 %v267
        %v269 = vlaneseq
        %v270 = vshrl.u32 %v269, 7
        %v271 = vsub.s32 %v268, %v270
        %v272 = vrot.slane %v258, %v271
        %v274 = vunpack.c.l.s4 842150450
        %v275 = vunpack.c.0.s8 %v274
        %v276 = vlaneseq
        %v277 = vshrl.u32 %v276, 7
        %v278 = vsub.s32 %v275, %v277
        %v279 = vrot.slane %v258, %v278
        %v281 = vunpack.c.l.s4 1414812756
        %v282 = vunpack.c.0.s8 %v281
        %v283 = vlaneseq
        %v284 = vshrl.u32 %v283, 7
        %v285 = vsub.s32 %v282, %v284
        %v286 = vrot.slane %v258, %v285
        %v288 = vunpack.c.l.s4 1987475062
        %v289 = vunpack.c.0.s8 %v288
        %v290 = vlaneseq
        %v291 = vshrl.u32 %v290, 7
        %v292 = vsub.s32 %v289, %v291
        %v293 = vrot.slane %v258, %v292
        %vm298 = vcmask 1041408
        %v299 = vsel %vm298, %v272, 0.0
        %v300 = vrot.slane %v299, 4
        %v301 = vadd.f32 %v299, %v300
        %v302 = vrot.slane %v301, 2
        %v303 = vadd.f32 %v301, %v302
        %v304 = vrot.slane %v303, 1
        %v305 = vadd.f32 %v303, %v304
        %v306 = vsel %vm298, %v279, 0.0
        %v307 = vrot.slane %v306, 4
        %v308 = vadd.f32 %v306, %v307
        %v309 = vrot.slane %v308, 2
        %v310 = vadd.f32 %v308, %v309
        %v311 = vrot.slane %v310, 1
        %v312 = vadd.f32 %v310, %v311
        %v313 = vsel %vm298, %v286, 0.0
        %v314 = vrot.slane %v313, 4
        %v315 = vadd.f32 %v313, %v314
        %v316 = vrot.slane %v315, 2
        %v317 = vadd.f32 %v315, %v316
        %v318 = vrot.slane %v317, 1
        %v319 = vadd.f32 %v317, %v318
        %v320 = vsel %vm298, %v293, 0.0
        %v321 = vrot.slane %v320, 4
        %v322 = vadd.f32 %v320, %v321
        %v323 = vrot.slane %v322, 2
        %v324 = vadd.f32 %v322, %v323
        %v325 = vrot.slane %v324, 1
        %v326 = vadd.f32 %v324, %v325
        %v329 = vunpack.c.l.s4 269488144
        %v330 = vunpack.c.0.s8 %v329
        %v331 = vlaneseq
        %v332 = vshrl.u32 %v331, 7
        %v333 = vsub.s32 %v330, %v332
        %v334 = vrot.slane %v264, %v333
        %v336 = vunpack.c.l.s4 842150450
        %v337 = vunpack.c.0.s8 %v336
        %v338 = vlaneseq
        %v339 = vshrl.u32 %v338, 7
        %v340 = vsub.s32 %v337, %v339
        %v341 = vrot.slane %v264, %v340
        %v343 = vunpack.c.l.s4 1414812756
        %v344 = vunpack.c.0.s8 %v343
        %v345 = vlaneseq
        %v346 = vshrl.u32 %v345, 7
        %v347 = vsub.s32 %v344, %v346
        %v348 = vrot.slane %v264, %v347
        %v350 = vunpack.c.l.s4 1987475062
        %v351 = vunpack.c.0.s8 %v350
        %v352 = vlaneseq
        %v353 = vshrl.u32 %v352, 7
        %v354 = vsub.s32 %v351, %v353
        %v355 = vrot.slane %v264, %v354
        %v360 = vsel %vm298, %v334, 0.0
        %v361 = vrot.slane %v360, 4
        %v362 = vadd.f32 %v360, %v361
        %v363 = vrot.slane %v362, 2
        %v364 = vadd.f32 %v362, %v363
        %v365 = vrot.slane %v364, 1
        %v366 = vadd.f32 %v364, %v365
        %v367 = vsel %vm298, %v341, 0.0
        %v368 = vrot.slane %v367, 4
        %v369 = vadd.f32 %v367, %v368
        %v370 = vrot.slane %v369, 2
        %v371 = vadd.f32 %v369, %v370
        %v372 = vrot.slane %v371, 1
        %v373 = vadd.f32 %v371, %v372
        %v374 = vsel %vm298, %v348, 0.0
        %v375 = vrot.slane %v374, 4
        %v376 = vadd.f32 %v374, %v375
        %v377 = vrot.slane %v376, 2
        %v378 = vadd.f32 %v376, %v377
        %v379 = vrot.slane %v378, 1
        %v380 = vadd.f32 %v378, %v379
        %v381 = vsel %vm298, %v355, 0.0
        %v382 = vrot.slane %v381, 4
        %v383 = vadd.f32 %v381, %v382
        %v384 = vrot.slane %v383, 2
        %v385 = vadd.f32 %v383, %v384
        %v386 = vrot.slane %v385, 1
        %v387 = vadd.f32 %v385, %v386
        %v388 = vmul.f32 %v305, 0.001953125
        %v389 = vmul.f32 %v312, 0.001953125
        %v390 = vmul.f32 %v319, 0.001953125
        %v391 = vmul.f32 %v326, 0.001953125
        %v392 = vmul.f32 %v366, 0.001953125
        %v393 = vmul.f32 %v373, 0.001953125
        %v394 = vmul.f32 %v380, 0.001953125
        %v395 = vmul.f32 %v387, 0.001953125
        %v396 = vmul.f32 %v388, %v388
        %v397 = vmul.f32 %v389, %v389
        %v398 = vmul.f32 %v390, %v390
        %v399 = vmul.f32 %v391, %v391
        %v400 = vsub.f32 %v392, %v396
        %v401 = vsub.f32 %v393, %v397
        %v402 = vsub.f32 %v394, %v398
        %v403 = vsub.f32 %v395, %v399
        %v404 = vmax.f32 %v400, 0.0
        %v405 = vmax.f32 %v401, 0.0
        %v406 = vmax.f32 %v402, 0.0
        %v407 = vmax.f32 %v403, 0.0
        %v408 = vadd.f32 %v404, 1e-05
        %v409 = vadd.f32 %v405, 1e-05
        %v410 = vadd.f32 %v406, 1e-05
        %v411 = vadd.f32 %v407, 1e-05
        %v412 = vrsqrt.pop %v408
        %v413 = vrsqrt.pop %v409
        %v414 = vrsqrt.pop %v410
        %v415 = vrsqrt.pop %v411
        %v416 = vld [vmem:[%s236] sm:$0xff]
        %v417 = vld [vmem:[%s243] sm:$0xff]
        %v422 = vcombine.low %v412, %v413
        %v423 = vcombine.low %v414, %v415
        %v425 = vunpack.c.l.s4 1983009808
        %v426 = vunpack.c.0.s8 %v425
        %v427 = vlaneseq
        %v428 = vshrl.u32 %v427, 7
        %v429 = vsub.s32 %v426, %v428
        %v430 = vrot.slane %v422, %v429
        %v432 = vunpack.c.l.s4 1983009808
        %v433 = vunpack.c.0.s8 %v432
        %v434 = vlaneseq
        %v435 = vshrl.u32 %v434, 7
        %v436 = vsub.s32 %v433, %v435
        %v437 = vrot.slane %v423, %v436
        %v438 = vcombine.low %v430, %v437
        %v440 = vmul.f32 %v416, %v438
        %v442 = vcombine.high %v440, %v440
        %v444 = vunpack.c.l.s4 1983009808
        %v445 = vunpack.c.0.s8 %v444
        %v446 = vlaneseq
        %v447 = vshrl.u32 %v446, 7
        %v448 = vsub.s32 %v445, %v447
        %v449 = vrot.slane %v440, %v448
        %v451 = vunpack.c.l.s4 1983009808
        %v452 = vunpack.c.0.s8 %v451
        %v453 = vlaneseq
        %v454 = vshrl.u32 %v453, 7
        %v455 = vsub.s32 %v452, %v454
        %v456 = vrot.slane %v442, %v455
        %v457 = vcombine.high %v449, %v449
        %v458 = vcombine.high %v456, %v456
        %v463 = vmul.f32 %v388, %v449
        %v464 = vmul.f32 %v389, %v457
        %v465 = vmul.f32 %v390, %v456
        %v466 = vmul.f32 %v391, %v458
        %v471 = vcombine.low %v463, %v464
        %v472 = vcombine.low %v465, %v466
        %v474 = vunpack.c.l.s4 1983009808
        %v475 = vunpack.c.0.s8 %v474
        %v476 = vlaneseq
        %v477 = vshrl.u32 %v476, 7
        %v478 = vsub.s32 %v475, %v477
        %v479 = vrot.slane %v471, %v478
        %v481 = vunpack.c.l.s4 1983009808
        %v482 = vunpack.c.0.s8 %v481
        %v483 = vlaneseq
        %v484 = vshrl.u32 %v483, 7
        %v485 = vsub.s32 %v482, %v484
        %v486 = vrot.slane %v472, %v485
        %v487 = vcombine.low %v479, %v486
        %v489 = vsub.f32 %v417, %v487
        %490 = vset.pattern.permute.xlu0 0
        %491 = vperm.xlu0 %490, %v440
        %v492 = vpop.permute.xlu0 %491
        %v494 = vmul.f32 %v253, %v492
        %v495 = vmul.f32 %v254, %v492
        %497 = vset.pattern.permute.xlu0 0
        %498 = vperm.xlu0 %497, %v489
        %v499 = vpop.permute.xlu0 %498
        %v501 = vadd.f32 %v494, %v499
        %v502 = vadd.f32 %v495, %v499
        %503 = vst [vmem:[%s229] sm:$0xff] %v501
        %504 = vst [vmem:[%s229 + $0x8] sm:$0xff] %v502
        %s505 = sand.u32 %s123, 1
        %s506 = scalar_lea.sflag [#allocation3], %s505
        %s507 = sand.u32 %s123, 1
        %s508 = smul.addr %s507, 16
        %s509 = scalar_lea.vmem [#allocation2], %s508
        // Predicated region
        $region33: #{tpu_custom_call.1} parent=31 // pred_check
          %p510 = pneg %p133
        $region34: #{tpu_custom_call.1} parent=31 // pred_check_branch
          %512 = sbr.rel (%p510) target = $region36
        $region35: #{tpu_custom_call.1} parent=31 // pred_region
          %s514 = ssub.s32 256, 256
          %515 = vsyncadd %s506, %s514
          %s516 = smul.addr %s22, 2
          %s517 = smul.addr %s21, 2
          %s518 = sadd.s32 %s516, %s517
          %s519 = smul.addr %s518, 128
          %s520 = scalar_lea.hbm %s3, %s519
          %s522 = sshll.u32 %s509, 4
          %s523 = int_to_ptr.vmem [resolvable:$true] %s522
          %525 = dma.vmem_to_hbm [thread:$0]  %s523, 256, %s520, %s506
        $region36: #{tpu_custom_call.1} parent=31 // pred_fallthru
          _
      $region32: #{tpu_custom_call.1} parent=5 // pred_fallthru
        _
      %p526 = scmp.le.s32.totalorder 2, %s12
      // Predicated region
      $region37: #{tpu_custom_call.1} parent=5 // pred_check
        %p527 = pneg %p526
      $region38: #{tpu_custom_call.1} parent=5 // pred_check_branch
        %529 = sbr.rel (%p527) target = $region40
      $region39: #{tpu_custom_call.1} parent=5 // pred_region
        %s530 = ssub.s32 %s12, 2
        // Predicated region
        $region41: #{tpu_custom_call.1} parent=39 // pred_check
          %p531 = pneg %p139
        $region42: #{tpu_custom_call.1} parent=39 // pred_check_branch
          %533 = sbr.rel (%p531) target = $region44
        $region43: #{tpu_custom_call.1} parent=39 // pred_region
          %s534 = sand.u32 %s124, 1
          %s535 = scalar_lea.sflag [#allocation3], %s534
          %s536 = sand.u32 %s124, 1
          %s537 = smul.addr %s536, 16
          %s538 = scalar_lea.vmem [#allocation2], %s537
          %539 = dma.done %s535, 256
        $region44: #{tpu_custom_call.1} parent=39 // pred_fallthru
          _
      $region40: #{tpu_custom_call.1} parent=5 // pred_fallthru
        _
    $region6: #{tpu_custom_call.1} parent=1 // loop_footer
      %s16 = sadd.s32 1, %s12
    $region7: #{tpu_custom_call.1} parent=1 // loop_footer_branch
      %11 = sbr.rel target = $region3
    $region8: #{tpu_custom_call.1} parent=1 // loop_exit
      _
    %540 = vsyncpa [#allocation3], 1
    %s541 = scalar_lea.sflag [#allocation3], 1
    %542 = vsyncpa %s541, 1

</llo_original>
